<compile_context>
chip_gen: v7x
topology: tpu7x:2x2x1
jax: 0.10.0
libtpu: 0.0.40
codegen_flags: <defaults>
</compile_context>

<pallas_src>
import jax
import jax.numpy as jnp
from jax import lax
from jax.experimental import pallas as pl
from jax.experimental.pallas import tpu as pltpu

BN_EPS = 1e-5
NEG_SLOPE = 0.01


def _mlp_kernel(x_ref, w1_ref, b1_ref, w2_ref, b2_ref, w3_ref, b3_ref, out_ref):
    # x: (F, TB) -- features on sublanes, batch on lanes.
    x = x_ref[...]

    # fc1 (+ folded bn1) + leaky_relu : (64, F) @ (F, TB) -> (64, TB)
    h = jnp.dot(w1_ref[...], x, preferred_element_type=jnp.float32) + b1_ref[...]
    h = jnp.where(h >= 0, h, NEG_SLOPE * h)

    # dropout(p=0.3): identity in eval mode.

    # fc2 (+ folded bn2) + leaky_relu : (32, 64) @ (64, TB) -> (32, TB)
    h = jnp.dot(w2_ref[...], h, preferred_element_type=jnp.float32) + b2_ref[...]
    h = jnp.where(h >= 0, h, NEG_SLOPE * h)

    # fc3 as a sublane multiply-reduce (avoids an M=1 MXU matmul): (1, TB)
    out_ref[...] = jnp.sum(h * w3_ref[...], axis=0, keepdims=True) + b3_ref[...]


def holding_time_forward(params, day_type, busroute_id, location_id, dep_hour_min,
                         *, batch_tile=2048):
    """Eval-mode forward pass of HoldingTimeModel (matches the nn.Module)."""
    # --- glue: embedding gathers + concat (plain JAX) ---
    route_emb = jnp.take(params["route_emb"], busroute_id[:, 0], axis=0)      # (B, Rd)
    location_emb = jnp.take(params["loc_emb"], location_id[:, 0], axis=0)     # (B, Ld)
    x = jnp.concatenate(
        [day_type, route_emb, location_emb, dep_hour_min[:, None]], axis=1
    ).astype(jnp.float32)                                                     # (B, F)

    B, F = x.shape

    # Fold eval-mode BatchNorm into the linear layers (exact in eval mode).
    s1 = params["g1"] * lax.rsqrt(params["v1"] + BN_EPS)                      # (64,)
    w1f = params["w1"] * s1[None, :]                                          # (F, 64)
    b1f = (params["b1"] - params["m1"]) * s1 + params["be1"]                  # (64,)
    s2 = params["g2"] * lax.rsqrt(params["v2"] + BN_EPS)                      # (32,)
    w2f = params["w2"] * s2[None, :]                                          # (64, 32)
    b2f = (params["b2"] - params["m2"]) * s2 + params["be2"]                  # (32,)

    # Transposed layout: features on sublanes, batch on lanes.
    w1t = w1f.T.astype(jnp.float32)                                           # (64, F)
    b1c = b1f.reshape(-1, 1).astype(jnp.float32)                              # (64, 1)
    w2t = w2f.T.astype(jnp.float32)                                           # (32, 64)
    b2c = b2f.reshape(-1, 1).astype(jnp.float32)                              # (32, 1)
    w3c = params["w3"].reshape(-1, 1).astype(jnp.float32)                     # (32, 1)
    b3c = params["b3"].reshape(1, 1).astype(jnp.float32)                      # (1, 1)

    # Batch tile: multiple of 128; tiny batches run in a single grid step.
    TB = max(128, min(int(batch_tile), pl.cdiv(B, 128) * 128))
    n_tiles = pl.cdiv(B, TB)
    B_pad = n_tiles * TB

    xt = x.T                                                                  # (F, B)
    if B_pad != B:
        xt = jnp.pad(xt, ((0, 0), (0, B_pad - B)))

    def full_spec(a):
        # Constant block index -> fetched once, kept resident across the grid.
        return pl.BlockSpec(a.shape, lambda i: (0, 0))

    in_specs = [pl.BlockSpec((F, TB), lambda i: (0, i))] + [
        full_spec(a) for a in (w1t, b1c, w2t, b2c, w3c, b3c)
    ]
    out_spec = pl.BlockSpec((1, TB), lambda i: (0, i))

    out = pl.pallas_call(
        _mlp_kernel,
        out_shape=jax.ShapeDtypeStruct((1, B_pad), jnp.float32),
        grid=(n_tiles,),
        in_specs=in_specs,
        out_specs=out_spec,
        compiler_params=pltpu.CompilerParams(dimension_semantics=("parallel",)),
    )(xt, w1t, b1c, w2t, b2c, w3c, b3c)

    return out[0, :B].reshape(B, 1)


def init_params(key, input_size, num_routes, num_locations,
                route_embedding_dim, location_embedding_dim):
    """Deterministic synthetic parameter init (shapes match nn.Module __init__)."""
    F = input_size + route_embedding_dim + location_embedding_dim
    ks = jax.random.split(key, 8)
    p = {
        "route_emb": jax.random.normal(ks[0], (num_routes, route_embedding_dim), jnp.float32),
        "loc_emb":   jax.random.normal(ks[1], (num_locations, location_embedding_dim), jnp.float32),
        # Linear weights stored as [in, out] so the reference computes x @ W.
        "w1": jax.random.normal(ks[2], (F, 64), jnp.float32) * 0.1,
        "b1": jax.random.normal(ks[3], (64,), jnp.float32) * 0.1,
        "w2": jax.random.normal(ks[4], (64, 32), jnp.float32) * 0.1,
        "b2": jax.random.normal(ks[5], (32,), jnp.float32) * 0.1,
        "w3": jax.random.normal(ks[6], (32, 1), jnp.float32) * 0.1,
        "b3": jax.random.normal(ks[7], (1,), jnp.float32) * 0.1,
        # BatchNorm1d(64) / BatchNorm1d(32) -- eval-mode running stats.
        "g1": jnp.ones((64,), jnp.float32),  "be1": jnp.zeros((64,), jnp.float32),
        "m1": jnp.zeros((64,), jnp.float32), "v1":  jnp.ones((64,), jnp.float32),
        "g2": jnp.ones((32,), jnp.float32),  "be2": jnp.zeros((32,), jnp.float32),
        "m2": jnp.zeros((32,), jnp.float32), "v2":  jnp.ones((32,), jnp.float32),
    }
    return p


def _reference_forward(params, day_type, busroute_id, location_id, dep_hour_min):
    """Plain-JAX reference (eval mode) for correctness checking."""
    route_emb = jnp.take(params["route_emb"], busroute_id[:, 0], axis=0)
    location_emb = jnp.take(params["loc_emb"], location_id[:, 0], axis=0)
    x = jnp.concatenate(
        [day_type, route_emb, location_emb, dep_hour_min[:, None]], axis=1
    ).astype(jnp.float32)

    def bn(h, g, be, m, v):
        return (h - m) * lax.rsqrt(v + BN_EPS) * g + be

    def lrelu(h):
        return jnp.where(h >= 0, h, NEG_SLOPE * h)

    h = lrelu(bn(x @ params["w1"] + params["b1"],
                 params["g1"], params["be1"], params["m1"], params["v1"]))
    h = lrelu(bn(h @ params["w2"] + params["b2"],
                 params["g2"], params["be2"], params["m2"], params["v2"]))
    return h @ params["w3"] + params["b3"]


if __name__ == "__main__":
    # Small shapes consistent with the module.
    input_size = 9            # day_type supplies input_size-1 features; +1 for dep_hour_min
    num_routes = 10
    num_locations = 20
    route_embedding_dim = 4
    location_embedding_dim = 4
    B = 16

    key = jax.random.PRNGKey(0)
    pkey, k1, k2, k3, k4 = jax.random.split(key, 5)

    params = init_params(pkey, input_size, num_routes, num_locations,
                         route_embedding_dim, location_embedding_dim)

    day_type = jax.random.normal(k1, (B, input_size - 1), jnp.float32)
    busroute_id = jax.random.randint(k2, (B, 1), 0, num_routes, jnp.int32)
    location_id = jax.random.randint(k3, (B, 1), 0, num_locations, jnp.int32)
    dep_hour_min = jax.random.uniform(k4, (B,), jnp.float32) * 24.0

    out = holding_time_forward(params, day_type, busroute_id, location_id, dep_hour_min)
    out = jax.block_until_ready(out)
    assert out.shape == (B, 1) and out.dtype == jnp.float32

    ref = _reference_forward(params, day_type, busroute_id, location_id, dep_hour_min)
    assert jnp.max(jnp.abs(out - ref)) < 1e-4, "mismatch vs reference"

    print("KERNEL_OK")
</pallas_src>

<mosaic_0001>
module attributes {stable_mosaic.version = 11 : i64} {
  func.func @_mlp_kernel(%arg0: i32, %arg1: memref<17x128xf32, #tpu.memory_space<vmem>>, %arg2: memref<64x17xf32, #tpu.memory_space<vmem>>, %arg3: memref<64x1xf32, #tpu.memory_space<vmem>>, %arg4: memref<32x64xf32, #tpu.memory_space<vmem>>, %arg5: memref<32x1xf32, #tpu.memory_space<vmem>>, %arg6: memref<32x1xf32, #tpu.memory_space<vmem>>, %arg7: memref<1x1xf32, #tpu.memory_space<vmem>>, %arg8: memref<1x128xf32, #tpu.memory_space<vmem>>) attributes {dimension_semantics = [#tpu.dimension_semantics<parallel>], iteration_bounds = array<i64: 1>, scalar_prefetch = 0 : i64, scratch_operands = 0 : i64, tpu.core_type = #tpu.core_type<tc>, window_params = [{transform_indices = @transform_0, window_bounds = array<i64: 17, 128>}, {pipeline_mode = #tpu.pipeline_mode<synchronous>, transform_indices = @transform_1, window_bounds = array<i64: 64, 17>}, {pipeline_mode = #tpu.pipeline_mode<synchronous>, transform_indices = @transform_2, window_bounds = array<i64: 64, 1>}, {pipeline_mode = #tpu.pipeline_mode<synchronous>, transform_indices = @transform_3, window_bounds = array<i64: 32, 64>}, {pipeline_mode = #tpu.pipeline_mode<synchronous>, transform_indices = @transform_4, window_bounds = array<i64: 32, 1>}, {pipeline_mode = #tpu.pipeline_mode<synchronous>, transform_indices = @transform_5, window_bounds = array<i64: 32, 1>}, {pipeline_mode = #tpu.pipeline_mode<synchronous>, transform_indices = @transform_6, window_bounds = array<i64: 1, 1>}, {transform_indices = @transform_7, window_bounds = array<i64: 1, 128>}]} {
    %c0 = arith.constant 0 : index
    %c0_0 = arith.constant 0 : index
    %0 = vector.load %arg1[%c0, %c0_0] : memref<17x128xf32, #tpu.memory_space<vmem>>, vector<17x128xf32>
    %c0_1 = arith.constant 0 : index
    %c0_2 = arith.constant 0 : index
    %1 = vector.load %arg2[%c0_1, %c0_2] : memref<64x17xf32, #tpu.memory_space<vmem>>, vector<64x17xf32>
    %cst = arith.constant dense<0.000000e+00> : vector<64x128xf32>
    %2 = tpu.matmul %1, %0, %cst {dimension_numbers = #tpu.dot_dimension_numbers<[1], [0], [0], [1], [0, 0, 1, 1], [], []>} : vector<64x17xf32>, vector<17x128xf32>, vector<64x128xf32> -> vector<64x128xf32>
    %c0_3 = arith.constant 0 : index
    %c0_4 = arith.constant 0 : index
    %3 = vector.load %arg3[%c0_3, %c0_4] : memref<64x1xf32, #tpu.memory_space<vmem>>, vector<64x1xf32>
    %4 = vector.broadcast %3 : vector<64x1xf32> to vector<64x128xf32>
    %5 = arith.addf %2, %4 : vector<64x128xf32>
    %cst_5 = arith.constant 0.000000e+00 : f32
    %6 = vector.broadcast %cst_5 : f32 to vector<64x128xf32>
    %7 = arith.cmpf oge, %5, %6 : vector<64x128xf32>
    %cst_6 = arith.constant 0.00999999977 : f32
    %8 = vector.broadcast %cst_6 : f32 to vector<64x128xf32>
    %9 = arith.mulf %8, %5 : vector<64x128xf32>
    %10 = arith.select %7, %5, %9 : vector<64x128xi1>, vector<64x128xf32>
    %c0_7 = arith.constant 0 : index
    %c0_8 = arith.constant 0 : index
    %11 = vector.load %arg4[%c0_7, %c0_8] : memref<32x64xf32, #tpu.memory_space<vmem>>, vector<32x64xf32>
    %cst_9 = arith.constant dense<0.000000e+00> : vector<32x128xf32>
    %12 = tpu.matmul %11, %10, %cst_9 {dimension_numbers = #tpu.dot_dimension_numbers<[1], [0], [0], [1], [0, 0, 1, 1], [], []>} : vector<32x64xf32>, vector<64x128xf32>, vector<32x128xf32> -> vector<32x128xf32>
    %c0_10 = arith.constant 0 : index
    %c0_11 = arith.constant 0 : index
    %13 = vector.load %arg5[%c0_10, %c0_11] : memref<32x1xf32, #tpu.memory_space<vmem>>, vector<32x1xf32>
    %14 = vector.broadcast %13 : vector<32x1xf32> to vector<32x128xf32>
    %15 = arith.addf %12, %14 : vector<32x128xf32>
    %cst_12 = arith.constant 0.000000e+00 : f32
    %16 = vector.broadcast %cst_12 : f32 to vector<32x128xf32>
    %17 = arith.cmpf oge, %15, %16 : vector<32x128xf32>
    %cst_13 = arith.constant 0.00999999977 : f32
    %18 = vector.broadcast %cst_13 : f32 to vector<32x128xf32>
    %19 = arith.mulf %18, %15 : vector<32x128xf32>
    %20 = arith.select %17, %15, %19 : vector<32x128xi1>, vector<32x128xf32>
    %c0_14 = arith.constant 0 : index
    %c0_15 = arith.constant 0 : index
    %21 = vector.load %arg6[%c0_14, %c0_15] : memref<32x1xf32, #tpu.memory_space<vmem>>, vector<32x1xf32>
    %22 = vector.broadcast %21 : vector<32x1xf32> to vector<32x128xf32>
    %23 = arith.mulf %20, %22 : vector<32x128xf32>
    %cst_16 = arith.constant dense<0.000000e+00> : vector<128xf32>
    %24 = vector.multi_reduction <add>, %23, %cst_16 [0] : vector<32x128xf32> to vector<128xf32>
    %25 = vector.shape_cast %24 : vector<128xf32> to vector<1x128xf32>
    %c0_17 = arith.constant 0 : index
    %c0_18 = arith.constant 0 : index
    %26 = vector.load %arg7[%c0_17, %c0_18] : memref<1x1xf32, #tpu.memory_space<vmem>>, vector<1x1xf32>
    %27 = vector.broadcast %26 : vector<1x1xf32> to vector<1x128xf32>
    %28 = arith.addf %25, %27 : vector<1x128xf32>
    %c0_19 = arith.constant 0 : index
    %c0_20 = arith.constant 0 : index
    %29 = vector.load %arg8[%c0_19, %c0_20] : memref<1x128xf32, #tpu.memory_space<vmem>>, vector<1x128xf32>
    tpu.vector_store %arg8[%c0_19, %c0_20], %28 {strides = array<i32>} : memref<1x128xf32, #tpu.memory_space<vmem>>, vector<1x128xf32>,
    return
  }
  func.func @transform_0(%arg0: i32) -> (i32, i32) {
    %c0_i32 = arith.constant 0 : i32
    %c0_i32_0 = arith.constant 0 : i32
    return %c0_i32, %arg0 : i32, i32
  }
  func.func @transform_1(%arg0: i32) -> (i32, i32) {
    %c0_i32 = arith.constant 0 : i32
    %c0_i32_0 = arith.constant 0 : i32
    %c0_i32_1 = arith.constant 0 : i32
    return %c0_i32, %c0_i32_0 : i32, i32
  }
  func.func @transform_2(%arg0: i32) -> (i32, i32) {
    %c0_i32 = arith.constant 0 : i32
    %c0_i32_0 = arith.constant 0 : i32
    %c0_i32_1 = arith.constant 0 : i32
    return %c0_i32, %c0_i32_0 : i32, i32
  }
  func.func @transform_3(%arg0: i32) -> (i32, i32) {
    %c0_i32 = arith.constant 0 : i32
    %c0_i32_0 = arith.constant 0 : i32
    %c0_i32_1 = arith.constant 0 : i32
    return %c0_i32, %c0_i32_0 : i32, i32
  }
  func.func @transform_4(%arg0: i32) -> (i32, i32) {
    %c0_i32 = arith.constant 0 : i32
    %c0_i32_0 = arith.constant 0 : i32
    %c0_i32_1 = arith.constant 0 : i32
    return %c0_i32, %c0_i32_0 : i32, i32
  }
  func.func @transform_5(%arg0: i32) -> (i32, i32) {
    %c0_i32 = arith.constant 0 : i32
    %c0_i32_0 = arith.constant 0 : i32
    %c0_i32_1 = arith.constant 0 : i32
    return %c0_i32, %c0_i32_0 : i32, i32
  }
  func.func @transform_6(%arg0: i32) -> (i32, i32) {
    %c0_i32 = arith.constant 0 : i32
    %c0_i32_0 = arith.constant 0 : i32
    %c0_i32_1 = arith.constant 0 : i32
    return %c0_i32, %c0_i32_0 : i32, i32
  }
  func.func @transform_7(%arg0: i32) -> (i32, i32) {
    %c0_i32 = arith.constant 0 : i32
    %c0_i32_0 = arith.constant 0 : i32
    return %c0_i32, %arg0 : i32, i32
  }
}

</mosaic_0001>

<llo_original>
// kernel: tpu_custom_call.1
$region0: #{tpu_custom_call.1}
  #allocation0 [shape = 'u32[]', space=smem, size = 0x4, offset = 0x4, fixed_abs, tag = 'smem constant byte address 0x4 - core index']
  #allocation1 [shape = 'u32[144,128]{1,0:T(1,128)}', space=vmem, size = 0x12000, scoped, tag = 'internal scratch']
  #allocation2 [shape = 'f32[1,1]{1,0:T(1,128)S(1)}', space=vmem, size = 0x200, scoped, tag = 'scoped memory for tpu_custom_call.1']
  %s0 = inlined_call_operand.vmem [shape: f32[17,128], index: 0, kind: input, shape index: {}]
  %s1 = inlined_call_operand.vmem [shape: f32[64,17], index: 1, kind: input, shape index: {}]
  %s2 = inlined_call_operand.vmem [shape: f32[64,1], index: 2, kind: input, shape index: {}]
  %s3 = inlined_call_operand.vmem [shape: f32[32,64], index: 3, kind: input, shape index: {}]
  %s4 = inlined_call_operand.vmem [shape: f32[32,1], index: 4, kind: input, shape index: {}]
  %s5 = inlined_call_operand.vmem [shape: f32[32,1], index: 5, kind: input, shape index: {}]
  %s6 = inlined_call_operand.<no memory space> [shape: f32[1,1], index: 6, kind: input, shape index: {}]
  %s7 = inlined_call_operand.hbm [shape: f32[1,128], index: 7, kind: output, shape index: {}]
  %s8 = sld [smem:[#allocation0]]
  $region38: #{tpu_custom_call.1} parent=0
    _
  %s10 = ssub.s32 1, %s8
  %s11 = scalar_select 0, %s10, %s8
  %v12 = vstv %s6
  %13 = vst [vmem:[#allocation2] sm:$0x1] %v12
  $region1: #{tpu_custom_call.1} parent=0
    #allocation3 [shape = 'u8[512]{0}', space=vmem, size = 0x400, scoped, tag = 'output window, operand 0, single buffered']
    #allocation4 [shape = 's32[1]{0}', space=sflag, size = 0x4, scoped, tag = 'scoped memory for tpu_custom_call.1']
    %14 = vsyncpa [#allocation4], 0
    // Predicated region
    $region2: #{tpu_custom_call.1} parent=1 // pred_check
      _
    $region3: #{tpu_custom_call.1} parent=1 // pred_check_branch
      %16 = sbr.rel (0) target = $region5
    $region4: #{tpu_custom_call.1} parent=1 // pred_region
      _
    $region5: #{tpu_custom_call.1} parent=1 // pred_fallthru
      _
    // Predicated region
    $region6: #{tpu_custom_call.1} parent=1 // pred_check
      _
    $region7: #{tpu_custom_call.1} parent=1 // pred_check_branch
      %18 = sbr.rel (0) target = $region9
    $region8: #{tpu_custom_call.1} parent=1 // pred_region
      _
    $region9: #{tpu_custom_call.1} parent=1 // pred_fallthru
      _
    // Predicated region
    $region10: #{tpu_custom_call.1} parent=1 // pred_check
      _
    $region11: #{tpu_custom_call.1} parent=1 // pred_check_branch
      %20 = sbr.rel (0) target = $region13
    $region12: #{tpu_custom_call.1} parent=1 // pred_region
      _
    $region13: #{tpu_custom_call.1} parent=1 // pred_fallthru
      _
    // Predicated region
    $region14: #{tpu_custom_call.1} parent=1 // pred_check
      _
    $region15: #{tpu_custom_call.1} parent=1 // pred_check_branch
      %22 = sbr.rel (0) target = $region17
    $region16: #{tpu_custom_call.1} parent=1 // pred_region
      _
    $region17: #{tpu_custom_call.1} parent=1 // pred_fallthru
      _
    // Predicated region
    $region18: #{tpu_custom_call.1} parent=1 // pred_check
      _
    $region19: #{tpu_custom_call.1} parent=1 // pred_check_branch
      %24 = sbr.rel (0) target = $region21
    $region20: #{tpu_custom_call.1} parent=1 // pred_region
      _
    $region21: #{tpu_custom_call.1} parent=1 // pred_fallthru
      _
    // Predicated region
    $region22: #{tpu_custom_call.1} parent=1 // pred_check
      _
    $region23: #{tpu_custom_call.1} parent=1 // pred_check_branch
      %26 = sbr.rel (0) target = $region25
    $region24: #{tpu_custom_call.1} parent=1 // pred_region
      _
    $region25: #{tpu_custom_call.1} parent=1 // pred_fallthru
      _
    // Predicated region
    $region26: #{tpu_custom_call.1} parent=1 // pred_check
      _
    $region27: #{tpu_custom_call.1} parent=1 // pred_check_branch
      %28 = sbr.rel (0) target = $region29
    $region28: #{tpu_custom_call.1} parent=1 // pred_region
      _
    $region29: #{tpu_custom_call.1} parent=1 // pred_fallthru
      _
    %v29 = vld [vmem:[%s0] sm:$0xff]
    %v30 = vld [vmem:[%s0 + $0x8] sm:$0xff]
    %v31 = vld [vmem:[%s0 + $0x10] sm:$0x1]
    %v32 = vld [vmem:[%s1] sm:$0xff]
    %v33 = vld [vmem:[%s1 + $0x8] sm:$0xff]
    %v34 = vld [vmem:[%s1 + $0x10] sm:$0xff]
    %v35 = vld [vmem:[%s1 + $0x18] sm:$0xff]
    %v36 = vld [vmem:[%s1 + $0x20] sm:$0xff]
    %v37 = vld [vmem:[%s1 + $0x28] sm:$0xff]
    %v38 = vld [vmem:[%s1 + $0x30] sm:$0xff]
    %v39 = vld [vmem:[%s1 + $0x38] sm:$0xff]
    %v40 = vld [vmem:[%s2] sm:$0xff]
    %v41 = vld [vmem:[%s2 + $0x8] sm:$0xff]
    %v42 = vld [vmem:[%s2 + $0x10] sm:$0xff]
    %v43 = vld [vmem:[%s2 + $0x18] sm:$0xff]
    %v44 = vld [vmem:[%s2 + $0x20] sm:$0xff]
    %v45 = vld [vmem:[%s2 + $0x28] sm:$0xff]
    %v46 = vld [vmem:[%s2 + $0x30] sm:$0xff]
    %v47 = vld [vmem:[%s2 + $0x38] sm:$0xff]
    %49 = vset.pattern.permute.xlu0 0
    %50 = vperm.xlu0 %49, %v40
    %v51 = vpop.permute.xlu0 %50
    %54 = vset.pattern.permute.xlu0 0
    %55 = vperm.xlu0 %54, %v41
    %v56 = vpop.permute.xlu0 %55
    %59 = vset.pattern.permute.xlu0 0
    %60 = vperm.xlu0 %59, %v42
    %v61 = vpop.permute.xlu0 %60
    %64 = vset.pattern.permute.xlu0 0
    %65 = vperm.xlu0 %64, %v43
    %v66 = vpop.permute.xlu0 %65
    %69 = vset.pattern.permute.xlu0 0
    %70 = vperm.xlu0 %69, %v44
    %v71 = vpop.permute.xlu0 %70
    %74 = vset.pattern.permute.xlu0 0
    %75 = vperm.xlu0 %74, %v45
    %v76 = vpop.permute.xlu0 %75
    %79 = vset.pattern.permute.xlu0 0
    %80 = vperm.xlu0 %79, %v46
    %v81 = vpop.permute.xlu0 %80
    %84 = vset.pattern.permute.xlu0 0
    %85 = vperm.xlu0 %84, %v47
    %v86 = vpop.permute.xlu0 %85
    %vm88 = vcmask 138240
    %v90 = vsel %vm88, %v32, 0
    %v93 = vsel %vm88, %v33, 0
    %v96 = vsel %vm88, %v34, 0
    %v99 = vsel %vm88, %v35, 0
    %v102 = vsel %vm88, %v36, 0
    %v105 = vsel %vm88, %v37, 0
    %v108 = vsel %vm88, %v38, 0
    %v111 = vsel %vm88, %v39, 0
    %vm113 = vcmask 1040384
    %v115 = vsel %vm113, %v31, 0
    %117 = vmatprep.subr.mxu0 0.0
    %118 = vmatpush1.msra.mxu0 %v29
    %119 = vmatprep.subr.mxu0 0.0
    %120 = vmatpush1.msra.mxu0 %v30
    %121 = vmatprep.subr.mxu0 0.0
    %122 = vmatpush1.msra.mxu0 %v115
    %123 = vmatprep.subr.mxu0 0.0
    %124 = vmatpush1.msra.mxu0 0.0
    %125 = vmatprep.subr.mxu0 0.0
    %126 = vmatpush1.msra.mxu0 0.0
    %127 = vmatprep.subr.mxu0 0.0
    %128 = vmatpush1.msra.mxu0 0.0
    %129 = vmatprep.subr.mxu0 0.0
    %130 = vmatpush1.msra.mxu0 0.0
    %131 = vmatprep.subr.mxu0 0.0
    %132 = vmatpush1.msra.mxu0 0.0
    %133 = vmatprep.subr.mxu0 0.0
    %134 = vmatpush1.msra.mxu0 0.0
    %135 = vmatprep.subr.mxu0 0.0
    %136 = vmatpush1.msra.mxu0 0.0
    %137 = vmatprep.subr.mxu0 0.0
    %138 = vmatpush1.msra.mxu0 0.0
    %139 = vmatprep.subr.mxu0 0.0
    %140 = vmatpush1.msra.mxu0 0.0
    %141 = vmatprep.subr.mxu0 0.0
    %142 = vmatpush1.msra.mxu0 0.0
    %143 = vmatprep.subr.mxu0 0.0
    %144 = vmatpush1.msra.mxu0 0.0
    %145 = vmatprep.subr.mxu0 0.0
    %146 = vmatpush1.msra.mxu0 0.0
    %147 = vmatprep.subr.mxu0 0.0
    %148 = vmatpush1.msra.mxu0 0.0
    %149 = vmatprep.subr.mxu0 0.0
    %150 = vmatpush1.msra.mxu0 0.0
    %151 = vmatprep.subr.mxu0 0.0
    %152 = vmatpush1.msra.mxu0 0.0
    %153 = vmatprep.subr.mxu0 0.0
    %154 = vmatpush1.msra.mxu0 0.0
    %155 = vmatprep.subr.mxu0 0.0
    %156 = vmatpush1.msra.mxu0 0.0
    %157 = vmatprep.subr.mxu0 0.0
    %158 = vmatpush1.msra.mxu0 0.0
    %159 = vmatprep.subr.mxu0 0.0
    %160 = vmatpush1.msra.mxu0 0.0
    %161 = vmatprep.subr.mxu0 0.0
    %162 = vmatpush1.msra.mxu0 0.0
    %163 = vmatprep.subr.mxu0 0.0
    %164 = vmatpush1.msra.mxu0 0.0
    %165 = vmatprep.subr.mxu0 0.0
    %166 = vmatpush1.msra.mxu0 0.0
    %167 = vmatprep.subr.mxu0 0.0
    %168 = vmatpush1.msra.mxu0 0.0
    %169 = vmatprep.subr.mxu0 0.0
    %170 = vmatpush1.msra.mxu0 0.0
    %171 = vmatprep.subr.mxu0 0.0
    %172 = vmatpush1.msra.mxu0 0.0
    %173 = vmatprep.subr.mxu0 0.0
    %174 = vmatpush1.msra.mxu0 0.0
    %175 = vmatprep.subr.mxu0 0.0
    %176 = vmatpush1.msra.mxu0 0.0
    %177 = vmatprep.subr.mxu0 0.0
    %178 = vmatpush1.msra.mxu0 0.0
    %179 = vmatprep.subr.mxu0 0.0
    %180 = vmatpush1.msra.mxu0 0.0
    %181 = vmatprep.mubr.f32.mxu0 0.0
    %182 = vmatmul.mubr.f32.gmra.mrb[0].mxu0 %v90
    %v183 = vpop.f32.mrb[0].mxu0
    %v184 = vadd.f32 %v51, %v183
    %v185 = vpop.f32.mrb[0].mxu0
    %186 = vmatprep.mubr.f32.mxu0 0.0
    %187 = vmatmul.mubr.f32.gmra.mrb[0].mxu0 %v93
    %v188 = vpop.f32.mrb[0].mxu0
    %v189 = vadd.f32 %v56, %v188
    %v190 = vpop.f32.mrb[0].mxu0
    %191 = vmatprep.mubr.f32.mxu0 0.0
    %192 = vmatmul.mubr.f32.gmra.mrb[0].mxu0 %v96
    %v193 = vpop.f32.mrb[0].mxu0
    %v194 = vadd.f32 %v61, %v193
    %v195 = vpop.f32.mrb[0].mxu0
    %196 = vmatprep.mubr.f32.mxu0 0.0
    %197 = vmatmul.mubr.f32.gmra.mrb[0].mxu0 %v99
    %v198 = vpop.f32.mrb[0].mxu0
    %v199 = vadd.f32 %v66, %v198
    %v200 = vpop.f32.mrb[0].mxu0
    %201 = vmatprep.mubr.f32.mxu0 0.0
    %202 = vmatmul.mubr.f32.gmra.mrb[0].mxu0 %v102
    %v203 = vpop.f32.mrb[0].mxu0
    %v204 = vadd.f32 %v71, %v203
    %v205 = vpop.f32.mrb[0].mxu0
    %206 = vmatprep.mubr.f32.mxu0 0.0
    %207 = vmatmul.mubr.f32.gmra.mrb[0].mxu0 %v105
    %v208 = vpop.f32.mrb[0].mxu0
    %v209 = vadd.f32 %v76, %v208
    %v210 = vpop.f32.mrb[0].mxu0
    %211 = vmatprep.mubr.f32.mxu0 0.0
    %212 = vmatmul.mubr.f32.gmra.mrb[0].mxu0 %v108
    %v213 = vpop.f32.mrb[0].mxu0
    %v214 = vadd.f32 %v81, %v213
    %v215 = vpop.f32.mrb[0].mxu0
    %216 = vmatprep.mubr.f32.mxu0 0.0
    %217 = vmatmul.mubr.f32.gmra.mrb[0].mxu0 %v111
    %v218 = vpop.f32.mrb[0].mxu0
    %v219 = vadd.f32 %v86, %v218
    %v220 = vpop.f32.mrb[0].mxu0
    %221 = vdwg.mxu0
    %vm222 = vcmp.ge.f32.partialorder %v184, 0.0
    %vm223 = vcmp.ge.f32.partialorder %v189, 0.0
    %vm224 = vcmp.ge.f32.partialorder %v194, 0.0
    %vm225 = vcmp.ge.f32.partialorder %v199, 0.0
    %vm226 = vcmp.ge.f32.partialorder %v204, 0.0
    %vm227 = vcmp.ge.f32.partialorder %v209, 0.0
    %vm228 = vcmp.ge.f32.partialorder %v214, 0.0
    %vm229 = vcmp.ge.f32.partialorder %v219, 0.0
    %v230 = vmul.f32 %v184, 0.01
    %v231 = vmul.f32 %v189, 0.01
    %v232 = vmul.f32 %v194, 0.01
    %v233 = vmul.f32 %v199, 0.01
    %v234 = vmul.f32 %v204, 0.01
    %v235 = vmul.f32 %v209, 0.01
    %v236 = vmul.f32 %v214, 0.01
    %v237 = vmul.f32 %v219, 0.01
    %v238 = vsel %vm222, %v184, %v230
    %v239 = vsel %vm223, %v189, %v231
    %v240 = vsel %vm224, %v194, %v232
    %v241 = vsel %vm225, %v199, %v233
    %v242 = vsel %vm226, %v204, %v234
    %v243 = vsel %vm227, %v209, %v235
    %v244 = vsel %vm228, %v214, %v236
    %v245 = vsel %vm229, %v219, %v237
    %v246 = vld [vmem:[%s3] sm:$0xff]
    %v247 = vld [vmem:[%s3 + $0x8] sm:$0xff]
    %v248 = vld [vmem:[%s3 + $0x10] sm:$0xff]
    %v249 = vld [vmem:[%s3 + $0x18] sm:$0xff]
    %v250 = vld [vmem:[%s4] sm:$0xff]
    %v251 = vld [vmem:[%s4 + $0x8] sm:$0xff]
    %v252 = vld [vmem:[%s4 + $0x10] sm:$0xff]
    %v253 = vld [vmem:[%s4 + $0x18] sm:$0xff]
    %255 = vset.pattern.permute.xlu0 0
    %256 = vperm.xlu0 %255, %v250
    %v257 = vpop.permute.xlu0 %256
    %260 = vset.pattern.permute.xlu0 0
    %261 = vperm.xlu0 %260, %v251
    %v262 = vpop.permute.xlu0 %261
    %265 = vset.pattern.permute.xlu0 0
    %266 = vperm.xlu0 %265, %v252
    %v267 = vpop.permute.xlu0 %266
    %270 = vset.pattern.permute.xlu0 0
    %271 = vperm.xlu0 %270, %v253
    %v272 = vpop.permute.xlu0 %271
    %vm274 = vcmask 523264
    %v276 = vsel %vm274, %v246, 0
    %v279 = vsel %vm274, %v247, 0
    %v282 = vsel %vm274, %v248, 0
    %v285 = vsel %vm274, %v249, 0
    %287 = vmatprep.subr.mxu0 0.0
    %288 = vmatpush1.msra.mxu0 %v238
    %289 = vmatprep.subr.mxu0 0.0
    %290 = vmatpush1.msra.mxu0 %v239
    %291 = vmatprep.subr.mxu0 0.0
    %292 = vmatpush1.msra.mxu0 %v240
    %293 = vmatprep.subr.mxu0 0.0
    %294 = vmatpush1.msra.mxu0 %v241
    %295 = vmatprep.subr.mxu0 0.0
    %296 = vmatpush1.msra.mxu0 %v242
    %297 = vmatprep.subr.mxu0 0.0
    %298 = vmatpush1.msra.mxu0 %v243
    %299 = vmatprep.subr.mxu0 0.0
    %300 = vmatpush1.msra.mxu0 %v244
    %301 = vmatprep.subr.mxu0 0.0
    %302 = vmatpush1.msra.mxu0 %v245
    %303 = vmatprep.subr.mxu0 0.0
    %304 = vmatpush1.msra.mxu0 0.0
    %305 = vmatprep.subr.mxu0 0.0
    %306 = vmatpush1.msra.mxu0 0.0
    %307 = vmatprep.subr.mxu0 0.0
    %308 = vmatpush1.msra.mxu0 0.0
    %309 = vmatprep.subr.mxu0 0.0
    %310 = vmatpush1.msra.mxu0 0.0
    %311 = vmatprep.subr.mxu0 0.0
    %312 = vmatpush1.msra.mxu0 0.0
    %313 = vmatprep.subr.mxu0 0.0
    %314 = vmatpush1.msra.mxu0 0.0
    %315 = vmatprep.subr.mxu0 0.0
    %316 = vmatpush1.msra.mxu0 0.0
    %317 = vmatprep.subr.mxu0 0.0
    %318 = vmatpush1.msra.mxu0 0.0
    %319 = vmatprep.subr.mxu0 0.0
    %320 = vmatpush1.msra.mxu0 0.0
    %321 = vmatprep.subr.mxu0 0.0
    %322 = vmatpush1.msra.mxu0 0.0
    %323 = vmatprep.subr.mxu0 0.0
    %324 = vmatpush1.msra.mxu0 0.0
    %325 = vmatprep.subr.mxu0 0.0
    %326 = vmatpush1.msra.mxu0 0.0
    %327 = vmatprep.subr.mxu0 0.0
    %328 = vmatpush1.msra.mxu0 0.0
    %329 = vmatprep.subr.mxu0 0.0
    %330 = vmatpush1.msra.mxu0 0.0
    %331 = vmatprep.subr.mxu0 0.0
    %332 = vmatpush1.msra.mxu0 0.0
    %333 = vmatprep.subr.mxu0 0.0
    %334 = vmatpush1.msra.mxu0 0.0
    %335 = vmatprep.subr.mxu0 0.0
    %336 = vmatpush1.msra.mxu0 0.0
    %337 = vmatprep.subr.mxu0 0.0
    %338 = vmatpush1.msra.mxu0 0.0
    %339 = vmatprep.subr.mxu0 0.0
    %340 = vmatpush1.msra.mxu0 0.0
    %341 = vmatprep.subr.mxu0 0.0
    %342 = vmatpush1.msra.mxu0 0.0
    %343 = vmatprep.subr.mxu0 0.0
    %344 = vmatpush1.msra.mxu0 0.0
    %345 = vmatprep.subr.mxu0 0.0
    %346 = vmatpush1.msra.mxu0 0.0
    %347 = vmatprep.subr.mxu0 0.0
    %348 = vmatpush1.msra.mxu0 0.0
    %349 = vmatprep.subr.mxu0 0.0
    %350 = vmatpush1.msra.mxu0 0.0
    %351 = vmatprep.mubr.f32.mxu0 0.0
    %352 = vmatmul.mubr.f32.gmra.mrb[0].mxu0 %v276
    %v353 = vpop.f32.mrb[0].mxu0
    %v354 = vadd.f32 %v257, %v353
    %v355 = vpop.f32.mrb[0].mxu0
    %356 = vmatprep.mubr.f32.mxu0 0.0
    %357 = vmatmul.mubr.f32.gmra.mrb[0].mxu0 %v279
    %v358 = vpop.f32.mrb[0].mxu0
    %v359 = vadd.f32 %v262, %v358
    %v360 = vpop.f32.mrb[0].mxu0
    %361 = vmatprep.mubr.f32.mxu0 0.0
    %362 = vmatmul.mubr.f32.gmra.mrb[0].mxu0 %v282
    %v363 = vpop.f32.mrb[0].mxu0
    %v364 = vadd.f32 %v267, %v363
    %v365 = vpop.f32.mrb[0].mxu0
    %366 = vmatprep.mubr.f32.mxu0 0.0
    %367 = vmatmul.mubr.f32.gmra.mrb[0].mxu0 %v285
    %v368 = vpop.f32.mrb[0].mxu0
    %v369 = vadd.f32 %v272, %v368
    %v370 = vpop.f32.mrb[0].mxu0
    %371 = vdwg.mxu0
    %vm372 = vcmp.ge.f32.partialorder %v354, 0.0
    %vm373 = vcmp.ge.f32.partialorder %v359, 0.0
    %vm374 = vcmp.ge.f32.partialorder %v364, 0.0
    %vm375 = vcmp.ge.f32.partialorder %v369, 0.0
    %v376 = vmul.f32 %v354, 0.01
    %v377 = vmul.f32 %v359, 0.01
    %v378 = vmul.f32 %v364, 0.01
    %v379 = vmul.f32 %v369, 0.01
    %v380 = vsel %vm372, %v354, %v376
    %v381 = vsel %vm373, %v359, %v377
    %v382 = vsel %vm374, %v364, %v378
    %v383 = vsel %vm375, %v369, %v379
    %v384 = vld [vmem:[%s5] sm:$0xff]
    %v385 = vld [vmem:[%s5 + $0x8] sm:$0xff]
    %v386 = vld [vmem:[%s5 + $0x10] sm:$0xff]
    %v387 = vld [vmem:[%s5 + $0x18] sm:$0xff]
    %389 = vset.pattern.permute.xlu0 0
    %390 = vperm.xlu0 %389, %v384
    %v391 = vpop.permute.xlu0 %390
    %394 = vset.pattern.permute.xlu0 0
    %395 = vperm.xlu0 %394, %v385
    %v396 = vpop.permute.xlu0 %395
    %399 = vset.pattern.permute.xlu0 0
    %400 = vperm.xlu0 %399, %v386
    %v401 = vpop.permute.xlu0 %400
    %404 = vset.pattern.permute.xlu0 0
    %405 = vperm.xlu0 %404, %v387
    %v406 = vpop.permute.xlu0 %405
    %v408 = vmul.f32 %v380, %v391
    %v409 = vmul.f32 %v381, %v396
    %v410 = vmul.f32 %v382, %v401
    %v411 = vmul.f32 %v383, %v406
    %v412 = vadd.f32 %v408, %v409
    %v413 = vadd.f32 %v412, %v410
    %v414 = vadd.f32 %v413, %v411
    %v415 = vrot.slane %v414, 4
    %v416 = vadd.f32 %v414, %v415
    %v417 = vrot.slane %v416, 2
    %v418 = vadd.f32 %v416, %v417
    %v419 = vrot.slane %v418, 1
    %v420 = vadd.f32 %v418, %v419
    %v421 = vld [vmem:[#allocation2] sm:$0x1]
    %423 = vset.pattern.permute.xlu0 0
    %424 = vperm.xlu0 %423, %v421
    %v425 = vpop.permute.xlu0 %424
    %v427 = vlaneseq
    %v428 = vshrl.u32 %v427, 7
    %v429 = vsub.s32 0, %v428
    %v430 = vrot.slane %v425, %v429
    %v431 = vadd.f32 %v420, %v430
    %432 = vst [vmem:[#allocation3] sm:$0x1] %v431
    // Predicated region
    $region30: #{tpu_custom_call.1} parent=1 // pred_check
      _
    $region31: #{tpu_custom_call.1} parent=1 // pred_check_branch
      %434 = sbr.rel (0) target = $region33
    $region32: #{tpu_custom_call.1} parent=1 // pred_region
      %s436 = ssub.s32 16, 16
      %437 = vsyncadd [#allocation4], %s436
      %s439 = sshll.u32 [#allocation3], 4
      %s440 = int_to_ptr.vmem [resolvable:$true] %s439
      %442 = dma.vmem_to_hbm [thread:$0]  %s440, 16, %s7, [#allocation4]
    $region33: #{tpu_custom_call.1} parent=1 // pred_fallthru
      _
    // Predicated region
    $region34: #{tpu_custom_call.1} parent=1 // pred_check
      _
    $region35: #{tpu_custom_call.1} parent=1 // pred_check_branch
      %444 = sbr.rel (0) target = $region37
    $region36: #{tpu_custom_call.1} parent=1 // pred_region
      %445 = dma.done [#allocation4], 16
    $region37: #{tpu_custom_call.1} parent=1 // pred_fallthru
      _
    %446 = vsyncpa [#allocation4], 1

</llo_original>
